<compile_context>
chip_gen: v6e
topology: v6e:2x2x1
jax: 0.10.0
libtpu: 0.0.40
codegen_flags: <defaults>
</compile_context>

<pallas_src>
import jax
import jax.numpy as jnp
from jax.experimental import pallas as pl
from jax.experimental.pallas import tpu as pltpu


def _energy_mlp_kernel(c_ref, w1_ref, b1_ref, w2_ref, b2_ref, w3_ref, b3_ref,
                       o_ref):
    # c_ref: (D, TB)  -- combined [x;y] features, batch on the lane axis
    # w1: (H, D)  b1: (H, 1)
    # w2: (H, H)  b2: (H, 1)
    # w3: (1, H)  b3: (1, 1)
    # o_ref: (1, TB)  -- lane-dense energies for this batch tile
    cdt = w1_ref.dtype  # MXU operand dtype (bf16 by default)

    h = jnp.dot(w1_ref[...], c_ref[...],
                preferred_element_type=jnp.float32)          # (H, TB) f32
    h = jnp.maximum(h + b1_ref[...], 0.0)

    h = jnp.dot(w2_ref[...], h.astype(cdt),
                preferred_element_type=jnp.float32)          # (H, TB) f32
    h = jnp.maximum(h + b2_ref[...], 0.0)

    e = jnp.dot(w3_ref[...], h.astype(cdt),
                preferred_element_type=jnp.float32)          # (1, TB) f32
    o_ref[...] = (e + b3_ref[...]).astype(o_ref.dtype)


def _pick_tile_b(B):
    # Lane-aligned batch tiles sized for vreg / intermediate pressure
    # (h is (H, tile_b) f32), not for VMEM capacity (which has huge headroom).
    if B <= 256:
        return 128
    if B <= 1024:
        return 256
    return 512


def energy_model_forward(x, y, params, *, tile_b=None,
                         compute_dtype=jnp.bfloat16):
    """x: (B, input_size), y: (B, action_size) -> energy (B,) float32."""
    w1, b1, w2, b2, w3, b3 = params
    B, Dx = x.shape
    By, Dy = y.shape
    assert By == B
    H, D = w1.shape
    assert D == Dx + Dy

    # Wrapper-side concat + cast + transpose: batch goes to the lane axis and
    # layer 1 becomes a single K=D contraction inside the kernel.
    cT = jnp.concatenate([x, y], axis=-1).astype(compute_dtype).T   # (D, B)

    tb = int(tile_b) if tile_b is not None else _pick_tile_b(B)
    assert tb % 128 == 0, "tile_b must be a multiple of 128 (lane width)"
    # Pad the batch so the grid has >=2 steps (v7x: both TensorCores get work
    # under dimension_semantics=("parallel",)); padded columns are sliced off.
    B_pad = max(2 * tb, ((B + tb - 1) // tb) * tb)
    if B_pad != B:
        cT = jnp.pad(cT, ((0, 0), (0, B_pad - B)))

    w1c = w1.astype(compute_dtype)
    w2c = w2.astype(compute_dtype)
    w3c = w3.astype(compute_dtype)

    grid = (B_pad // tb,)
    # Note: at H=32 the (grid-invariant) weight blocks are tiny; if H is ever
    # scaled >=1024, single-buffer them (pipeline_mode=pl.Buffered(1)).
    out = pl.pallas_call(
        _energy_mlp_kernel,
        out_shape=jax.ShapeDtypeStruct((1, B_pad), jnp.float32),
        grid_spec=pltpu.PrefetchScalarGridSpec(
            num_scalar_prefetch=0,
            grid=grid,
            in_specs=[
                pl.BlockSpec((D, tb), lambda i: (0, i)),    # c^T batch tile
                pl.BlockSpec((H, D), lambda i: (0, 0)),     # w1 (resident)
                pl.BlockSpec((H, 1), lambda i: (0, 0)),     # b1
                pl.BlockSpec((H, H), lambda i: (0, 0)),     # w2
                pl.BlockSpec((H, 1), lambda i: (0, 0)),     # b2
                pl.BlockSpec((1, H), lambda i: (0, 0)),     # w3
                pl.BlockSpec((1, 1), lambda i: (0, 0)),     # b3
            ],
            # Lane-dense output: each grid step writes a contiguous tb-lane
            # slice of the single output row.
            out_specs=pl.BlockSpec((1, tb), lambda i: (0, i)),
        ),
        compiler_params=pltpu.CompilerParams(
            dimension_semantics=("parallel",)),
    )(cT, w1c, b1, w2c, b2, w3c, b3)
    return out[0, :B]   # squeeze(-1) + drop batch padding


def init_params(key, input_size, action_size, hidden_size):
    """Deterministic synthetic init; weights in torch (out, in) layout, f32."""
    in_dim = input_size + action_size
    ks = jax.random.split(key, 6)

    def u(k, shape, fan_in):
        bound = 1.0 / float(fan_in) ** 0.5
        return jax.random.uniform(k, shape, jnp.float32, -bound, bound)

    w1 = u(ks[0], (hidden_size, in_dim), in_dim)
    b1 = u(ks[1], (hidden_size, 1), in_dim)
    w2 = u(ks[2], (hidden_size, hidden_size), hidden_size)
    b2 = u(ks[3], (hidden_size, hidden_size // hidden_size), hidden_size)
    b2 = u(ks[3], (hidden_size, 1), hidden_size)
    w3 = u(ks[4], (1, hidden_size), hidden_size)
    b3 = u(ks[5], (1, 1), hidden_size)
    return (w1, b1, w2, b2, w3, b3)


def _reference_f32(x, y, params):
    """Pure f32 reference matching the PyTorch module."""
    w1, b1, w2, b2, w3, b3 = params
    c = jnp.concatenate([x, y], axis=-1)
    h = jnp.maximum(c @ w1.T + b1[:, 0], 0.0)
    h = jnp.maximum(h @ w2.T + b2[:, 0], 0.0)
    return (h @ w3.T + b3[0, 0])[:, 0]


def _reference_matched(x, y, params, compute_dtype):
    """Reference with the same bf16-operand / f32-accumulate numerics as the kernel."""
    w1, b1, w2, b2, w3, b3 = params
    c = jnp.concatenate([x, y], axis=-1).astype(compute_dtype)
    h = jnp.dot(c, w1.T.astype(compute_dtype),
                preferred_element_type=jnp.float32) + b1[:, 0]
    h = jnp.maximum(h, 0.0)
    h = jnp.dot(h.astype(compute_dtype), w2.T.astype(compute_dtype),
                preferred_element_type=jnp.float32) + b2[:, 0]
    h = jnp.maximum(h, 0.0)
    e = jnp.dot(h.astype(compute_dtype), w3.T.astype(compute_dtype),
                preferred_element_type=jnp.float32) + b3[0, 0]
    return e[:, 0]


if __name__ == "__main__":
    input_size, action_size, hidden_size = 16, 8, 32
    batch = 8

    key = jax.random.PRNGKey(0)
    kx, ky, kp = jax.random.split(key, 3)
    x = jax.random.normal(kx, (batch, input_size), jnp.float32)
    y = jax.random.normal(ky, (batch, action_size), jnp.float32)
    params = init_params(kp, input_size, action_size, hidden_size)

    # Default (bf16 MXU operands, f32 accumulation) path.
    energy = jax.jit(energy_model_forward)(x, y, params)
    energy = jax.block_until_ready(energy)
    assert energy.shape == (batch,)

    # Accuracy gate for the bf16 path: exact-ish match vs a bf16-matched
    # reference, and bounded quantization error vs the pure f32 reference.
    ref_bf16 = _reference_matched(x, y, params, jnp.bfloat16)
    ref_f32 = _reference_f32(x, y, params)
    assert jnp.allclose(energy, ref_bf16, atol=2e-3, rtol=2e-3)
    assert jnp.allclose(energy, ref_f32, atol=5e-2, rtol=5e-2)

    # Full-precision path also supported.
    energy_f32 = jax.block_until_ready(
        energy_model_forward(x, y, params, compute_dtype=jnp.float32))
    assert jnp.allclose(energy_f32, ref_f32, atol=1e-3, rtol=1e-3)

    print("KERNEL_OK")
</pallas_src>

<mosaic_0001>
module attributes {stable_mosaic.version = 11 : i64} {
  func.func @_energy_mlp_kernel(%arg0: i32, %arg1: memref<24x128xbf16, #tpu.memory_space<vmem>>, %arg2: memref<32x24xbf16, #tpu.memory_space<vmem>>, %arg3: memref<32x1xf32, #tpu.memory_space<vmem>>, %arg4: memref<32x32xbf16, #tpu.memory_space<vmem>>, %arg5: memref<32x1xf32, #tpu.memory_space<vmem>>, %arg6: memref<1x32xbf16, #tpu.memory_space<vmem>>, %arg7: memref<1x1xf32, #tpu.memory_space<vmem>>, %arg8: memref<1x128xf32, #tpu.memory_space<vmem>>) attributes {dimension_semantics = [#tpu.dimension_semantics<parallel>], iteration_bounds = array<i64: 2>, scalar_prefetch = 0 : i64, scratch_operands = 0 : i64, tpu.core_type = #tpu.core_type<tc>, window_params = [{transform_indices = @transform_0, window_bounds = array<i64: 24, 128>}, {pipeline_mode = #tpu.pipeline_mode<synchronous>, transform_indices = @transform_1, window_bounds = array<i64: 32, 24>}, {pipeline_mode = #tpu.pipeline_mode<synchronous>, transform_indices = @transform_2, window_bounds = array<i64: 32, 1>}, {pipeline_mode = #tpu.pipeline_mode<synchronous>, transform_indices = @transform_3, window_bounds = array<i64: 32, 32>}, {pipeline_mode = #tpu.pipeline_mode<synchronous>, transform_indices = @transform_4, window_bounds = array<i64: 32, 1>}, {pipeline_mode = #tpu.pipeline_mode<synchronous>, transform_indices = @transform_5, window_bounds = array<i64: 1, 32>}, {pipeline_mode = #tpu.pipeline_mode<synchronous>, transform_indices = @transform_6, window_bounds = array<i64: 1, 1>}, {transform_indices = @transform_7, window_bounds = array<i64: 1, 128>}]} {
    %c0 = arith.constant 0 : index
    %c0_0 = arith.constant 0 : index
    %0 = vector.load %arg2[%c0, %c0_0] : memref<32x24xbf16, #tpu.memory_space<vmem>>, vector<32x24xbf16>
    %c0_1 = arith.constant 0 : index
    %c0_2 = arith.constant 0 : index
    %1 = vector.load %arg1[%c0_1, %c0_2] : memref<24x128xbf16, #tpu.memory_space<vmem>>, vector<24x128xbf16>
    %cst = arith.constant dense<0.000000e+00> : vector<32x128xf32>
    %2 = tpu.matmul %0, %1, %cst {dimension_numbers = #tpu.dot_dimension_numbers<[1], [0], [0], [1], [0, 0, 1, 1], [], []>} : vector<32x24xbf16>, vector<24x128xbf16>, vector<32x128xf32> -> vector<32x128xf32>
    %c0_3 = arith.constant 0 : index
    %c0_4 = arith.constant 0 : index
    %3 = vector.load %arg3[%c0_3, %c0_4] : memref<32x1xf32, #tpu.memory_space<vmem>>, vector<32x1xf32>
    %4 = vector.broadcast %3 : vector<32x1xf32> to vector<32x128xf32>
    %5 = arith.addf %2, %4 : vector<32x128xf32>
    %cst_5 = arith.constant 0.000000e+00 : f32
    %6 = vector.broadcast %cst_5 : f32 to vector<32x128xf32>
    %7 = arith.maximumf %5, %6 : vector<32x128xf32>
    %c0_6 = arith.constant 0 : index
    %c0_7 = arith.constant 0 : index
    %8 = vector.load %arg4[%c0_6, %c0_7] : memref<32x32xbf16, #tpu.memory_space<vmem>>, vector<32x32xbf16>
    %9 = arith.truncf %7 : vector<32x128xf32> to vector<32x128xbf16>
    %cst_8 = arith.constant dense<0.000000e+00> : vector<32x128xf32>
    %10 = tpu.matmul %8, %9, %cst_8 {dimension_numbers = #tpu.dot_dimension_numbers<[1], [0], [0], [1], [0, 0, 1, 1], [], []>} : vector<32x32xbf16>, vector<32x128xbf16>, vector<32x128xf32> -> vector<32x128xf32>
    %c0_9 = arith.constant 0 : index
    %c0_10 = arith.constant 0 : index
    %11 = vector.load %arg5[%c0_9, %c0_10] : memref<32x1xf32, #tpu.memory_space<vmem>>, vector<32x1xf32>
    %12 = vector.broadcast %11 : vector<32x1xf32> to vector<32x128xf32>
    %13 = arith.addf %10, %12 : vector<32x128xf32>
    %cst_11 = arith.constant 0.000000e+00 : f32
    %14 = vector.broadcast %cst_11 : f32 to vector<32x128xf32>
    %15 = arith.maximumf %13, %14 : vector<32x128xf32>
    %c0_12 = arith.constant 0 : index
    %c0_13 = arith.constant 0 : index
    %16 = vector.load %arg6[%c0_12, %c0_13] : memref<1x32xbf16, #tpu.memory_space<vmem>>, vector<1x32xbf16>
    %17 = arith.truncf %15 : vector<32x128xf32> to vector<32x128xbf16>
    %cst_14 = arith.constant dense<0.000000e+00> : vector<1x128xf32>
    %18 = tpu.matmul %16, %17, %cst_14 {dimension_numbers = #tpu.dot_dimension_numbers<[1], [0], [0], [1], [0, 0, 1, 1], [], []>} : vector<1x32xbf16>, vector<32x128xbf16>, vector<1x128xf32> -> vector<1x128xf32>
    %c0_15 = arith.constant 0 : index
    %c0_16 = arith.constant 0 : index
    %19 = vector.load %arg7[%c0_15, %c0_16] : memref<1x1xf32, #tpu.memory_space<vmem>>, vector<1x1xf32>
    %20 = vector.broadcast %19 : vector<1x1xf32> to vector<1x128xf32>
    %21 = arith.addf %18, %20 : vector<1x128xf32>
    %c0_17 = arith.constant 0 : index
    %c0_18 = arith.constant 0 : index
    %22 = vector.load %arg8[%c0_17, %c0_18] : memref<1x128xf32, #tpu.memory_space<vmem>>, vector<1x128xf32>
    tpu.vector_store %arg8[%c0_17, %c0_18], %21 {strides = array<i32>} : memref<1x128xf32, #tpu.memory_space<vmem>>, vector<1x128xf32>,
    return
  }
  func.func @transform_0(%arg0: i32) -> (i32, i32) {
    %c0_i32 = arith.constant 0 : i32
    %c0_i32_0 = arith.constant 0 : i32
    return %c0_i32, %arg0 : i32, i32
  }
  func.func @transform_1(%arg0: i32) -> (i32, i32) {
    %c0_i32 = arith.constant 0 : i32
    %c0_i32_0 = arith.constant 0 : i32
    %c0_i32_1 = arith.constant 0 : i32
    return %c0_i32, %c0_i32_0 : i32, i32
  }
  func.func @transform_2(%arg0: i32) -> (i32, i32) {
    %c0_i32 = arith.constant 0 : i32
    %c0_i32_0 = arith.constant 0 : i32
    %c0_i32_1 = arith.constant 0 : i32
    return %c0_i32, %c0_i32_0 : i32, i32
  }
  func.func @transform_3(%arg0: i32) -> (i32, i32) {
    %c0_i32 = arith.constant 0 : i32
    %c0_i32_0 = arith.constant 0 : i32
    %c0_i32_1 = arith.constant 0 : i32
    return %c0_i32, %c0_i32_0 : i32, i32
  }
  func.func @transform_4(%arg0: i32) -> (i32, i32) {
    %c0_i32 = arith.constant 0 : i32
    %c0_i32_0 = arith.constant 0 : i32
    %c0_i32_1 = arith.constant 0 : i32
    return %c0_i32, %c0_i32_0 : i32, i32
  }
  func.func @transform_5(%arg0: i32) -> (i32, i32) {
    %c0_i32 = arith.constant 0 : i32
    %c0_i32_0 = arith.constant 0 : i32
    %c0_i32_1 = arith.constant 0 : i32
    return %c0_i32, %c0_i32_0 : i32, i32
  }
  func.func @transform_6(%arg0: i32) -> (i32, i32) {
    %c0_i32 = arith.constant 0 : i32
    %c0_i32_0 = arith.constant 0 : i32
    %c0_i32_1 = arith.constant 0 : i32
    return %c0_i32, %c0_i32_0 : i32, i32
  }
  func.func @transform_7(%arg0: i32) -> (i32, i32) {
    %c0_i32 = arith.constant 0 : i32
    %c0_i32_0 = arith.constant 0 : i32
    return %c0_i32, %arg0 : i32, i32
  }
}

</mosaic_0001>

<llo_original>
// kernel: energy_model_forward.1
$region0: #{energy_model_forward.1}
  #allocation0 [shape = 'u32[]', space=smem, size = 0x4, offset = 0x4, fixed_abs, tag = 'smem constant byte address 0x4 - core index']
  #allocation1 [shape = 'u32[144,128]{1,0:T(1,128)}', space=vmem, size = 0x12000, scoped, tag = 'internal scratch']
  #allocation2 [shape = 'f32[1,1]{1,0:T(1,128)S(1)}', space=vmem, size = 0x200, scoped, tag = 'scoped memory for energy_model_forward.1']
  %s0 = inlined_call_operand.vmem [shape: bf16[24,256], index: 0, kind: input, shape index: {}]
  %s1 = inlined_call_operand.vmem [shape: bf16[32,24], index: 1, kind: input, shape index: {}]
  %s2 = inlined_call_operand.vmem [shape: f32[32,1], index: 2, kind: input, shape index: {}]
  %s3 = inlined_call_operand.vmem [shape: bf16[32,32], index: 3, kind: input, shape index: {}]
  %s4 = inlined_call_operand.vmem [shape: f32[32,1], index: 4, kind: input, shape index: {}]
  %s5 = inlined_call_operand.vmem [shape: bf16[1,32], index: 5, kind: input, shape index: {}]
  %s6 = inlined_call_operand.<no memory space> [shape: f32[1,1], index: 6, kind: input, shape index: {}]
  %s7 = inlined_call_operand.vmem [shape: f32[1,256], index: 7, kind: output, shape index: {}]
  %s8 = sld [smem:[#allocation0]]
  $region102: #{energy_model_forward.1} parent=0
    _
  %s10 = ssub.s32 1, %s8
  %s11 = scalar_select 0, %s10, %s8
  %v12 = vstv %s6
  %13 = vst [vmem:[#allocation2] sm:$0x1] %v12
  $region1: #{energy_model_forward.1} parent=0
    #allocation3 [shape = 'u8[12288]{0}', space=vmem, size = 0x3000, scoped, tag = 'input window, operand 0']
    loop: start=0, step=1, limit=4
    $region2: #{energy_model_forward.1} parent=1 // loop_pre_header
      _
    $region3: #{energy_model_forward.1} parent=1 // loop_header
      %s15 = sphi 0, %s19
      %p16 = scmp.ge.s32.totalorder %s15, 4
      %s25 = sphi 0, %s27
      %s28 = sphi 0, %s25
      %s29 = sphi 0, %s28
      %s45 = sphi 0, %s29
      %s49 = sphi 0, %s49
      %s51 = sphi 0, %s49
      %s52 = sphi 0, %s51
      %s66 = sphi 0, %s52
      %s70 = sphi 0, %s70
      %s72 = sphi 0, %s70
      %s73 = sphi 0, %s72
      %s87 = sphi 0, %s73
      %s91 = sphi 0, %s91
      %s93 = sphi 0, %s91
      %s94 = sphi 0, %s93
      %s108 = sphi 0, %s94
      %s112 = sphi 0, %s112
      %s114 = sphi 0, %s112
      %s115 = sphi 0, %s114
      %s129 = sphi 0, %s115
      %s133 = sphi 0, %s133
      %s135 = sphi 0, %s133
      %s136 = sphi 0, %s135
      %s150 = sphi 0, %s136
      %s154 = sphi 0, %s154
      %s156 = sphi 0, %s154
      %s157 = sphi 0, %s156
      %s171 = sphi 0, %s157
      %s177 = sphi 0, %s179
      %s180 = sphi 0, %s177
      %s181 = sphi 0, %s180
      %s197 = sphi 0, %s181
    $region4: #{energy_model_forward.1} parent=1 // loop_header_branch
      %18 = sbr.rel (%p16) target = $region8
    $region5: #{energy_model_forward.1} parent=1 // loop_body
      %s20 = ssub.s32 %s15, 1
      %s21 = ssub.s32 %s15, 2
      %s22 = sadd.s32 %s15, 1
      %s23 = ssub.s32 %s15, %s22
      %p24 = scmp.eq.s32.totalorder %s23, 0
      %s26 = sadd.s32 %s25, 1
      %s27 = scalar_select %p24, %s25, %s26
      %p30 = pneg %p24
      %p31 = scmp.eq.s32.totalorder %s15, 1
      %p32 = por %p30, %p31
      %p33 = scmp.ne.s32.totalorder %s25, %s28
      %p34 = scmp.eq.s32.totalorder %s15, 0
      %p35 = por %p33, %p34
      %p36 = scmp.ne.s32.totalorder %s25, %s28
      %p37 = scmp.eq.s32.totalorder %s20, 1
      %p38 = por %p36, %p37
      %p39 = scmp.ne.s32.totalorder %s28, %s29
      %p40 = scmp.eq.s32.totalorder %s20, 0
      %p41 = por %p39, %p40
      %p42 = scmp.ne.s32.totalorder %s28, %s29
      %p43 = scmp.eq.s32.totalorder %s21, 1
      %p44 = por %p42, %p43
      %p46 = scmp.ne.s32.totalorder %s29, %s45
      %p47 = scmp.eq.s32.totalorder %s21, 0
      %p48 = por %p46, %p47
      %s50 = sadd.s32 %s49, 1
      %p53 = scmp.eq.s32.totalorder %s15, 1
      %p54 = scmp.ne.s32.totalorder %s49, %s51
      %p55 = scmp.eq.s32.totalorder %s15, 0
      %p56 = por %p54, %p55
      %p57 = scmp.ne.s32.totalorder %s49, %s51
      %p58 = scmp.eq.s32.totalorder %s20, 1
      %p59 = por %p57, %p58
      %p60 = scmp.ne.s32.totalorder %s51, %s52
      %p61 = scmp.eq.s32.totalorder %s20, 0
      %p62 = por %p60, %p61
      %p63 = scmp.ne.s32.totalorder %s51, %s52
      %p64 = scmp.eq.s32.totalorder %s21, 1
      %p65 = por %p63, %p64
      %p67 = scmp.ne.s32.totalorder %s52, %s66
      %p68 = scmp.eq.s32.totalorder %s21, 0
      %p69 = por %p67, %p68
      %s71 = sadd.s32 %s70, 1
      %p74 = scmp.eq.s32.totalorder %s15, 1
      %p75 = scmp.ne.s32.totalorder %s70, %s72
      %p76 = scmp.eq.s32.totalorder %s15, 0
      %p77 = por %p75, %p76
      %p78 = scmp.ne.s32.totalorder %s70, %s72
      %p79 = scmp.eq.s32.totalorder %s20, 1
      %p80 = por %p78, %p79
      %p81 = scmp.ne.s32.totalorder %s72, %s73
      %p82 = scmp.eq.s32.totalorder %s20, 0
      %p83 = por %p81, %p82
      %p84 = scmp.ne.s32.totalorder %s72, %s73
      %p85 = scmp.eq.s32.totalorder %s21, 1
      %p86 = por %p84, %p85
      %p88 = scmp.ne.s32.totalorder %s73, %s87
      %p89 = scmp.eq.s32.totalorder %s21, 0
      %p90 = por %p88, %p89
      %s92 = sadd.s32 %s91, 1
      %p95 = scmp.eq.s32.totalorder %s15, 1
      %p96 = scmp.ne.s32.totalorder %s91, %s93
      %p97 = scmp.eq.s32.totalorder %s15, 0
      %p98 = por %p96, %p97
      %p99 = scmp.ne.s32.totalorder %s91, %s93
      %p100 = scmp.eq.s32.totalorder %s20, 1
      %p101 = por %p99, %p100
      %p102 = scmp.ne.s32.totalorder %s93, %s94
      %p103 = scmp.eq.s32.totalorder %s20, 0
      %p104 = por %p102, %p103
      %p105 = scmp.ne.s32.totalorder %s93, %s94
      %p106 = scmp.eq.s32.totalorder %s21, 1
      %p107 = por %p105, %p106
      %p109 = scmp.ne.s32.totalorder %s94, %s108
      %p110 = scmp.eq.s32.totalorder %s21, 0
      %p111 = por %p109, %p110
      %s113 = sadd.s32 %s112, 1
      %p116 = scmp.eq.s32.totalorder %s15, 1
      %p117 = scmp.ne.s32.totalorder %s112, %s114
      %p118 = scmp.eq.s32.totalorder %s15, 0
      %p119 = por %p117, %p118
      %p120 = scmp.ne.s32.totalorder %s112, %s114
      %p121 = scmp.eq.s32.totalorder %s20, 1
      %p122 = por %p120, %p121
      %p123 = scmp.ne.s32.totalorder %s114, %s115
      %p124 = scmp.eq.s32.totalorder %s20, 0
      %p125 = por %p123, %p124
      %p126 = scmp.ne.s32.totalorder %s114, %s115
      %p127 = scmp.eq.s32.totalorder %s21, 1
      %p128 = por %p126, %p127
      %p130 = scmp.ne.s32.totalorder %s115, %s129
      %p131 = scmp.eq.s32.totalorder %s21, 0
      %p132 = por %p130, %p131
      %s134 = sadd.s32 %s133, 1
      %p137 = scmp.eq.s32.totalorder %s15, 1
      %p138 = scmp.ne.s32.totalorder %s133, %s135
      %p139 = scmp.eq.s32.totalorder %s15, 0
      %p140 = por %p138, %p139
      %p141 = scmp.ne.s32.totalorder %s133, %s135
      %p142 = scmp.eq.s32.totalorder %s20, 1
      %p143 = por %p141, %p142
      %p144 = scmp.ne.s32.totalorder %s135, %s136
      %p145 = scmp.eq.s32.totalorder %s20, 0
      %p146 = por %p144, %p145
      %p147 = scmp.ne.s32.totalorder %s135, %s136
      %p148 = scmp.eq.s32.totalorder %s21, 1
      %p149 = por %p147, %p148
      %p151 = scmp.ne.s32.totalorder %s136, %s150
      %p152 = scmp.eq.s32.totalorder %s21, 0
      %p153 = por %p151, %p152
      %s155 = sadd.s32 %s154, 1
      %p158 = scmp.eq.s32.totalorder %s15, 1
      %p159 = scmp.ne.s32.totalorder %s154, %s156
      %p160 = scmp.eq.s32.totalorder %s15, 0
      %p161 = por %p159, %p160
      %p162 = scmp.ne.s32.totalorder %s154, %s156
      %p163 = scmp.eq.s32.totalorder %s20, 1
      %p164 = por %p162, %p163
      %p165 = scmp.ne.s32.totalorder %s156, %s157
      %p166 = scmp.eq.s32.totalorder %s20, 0
      %p167 = por %p165, %p166
      %p168 = scmp.ne.s32.totalorder %s156, %s157
      %p169 = scmp.eq.s32.totalorder %s21, 1
      %p170 = por %p168, %p169
      %p172 = scmp.ne.s32.totalorder %s157, %s171
      %p173 = scmp.eq.s32.totalorder %s21, 0
      %p174 = por %p172, %p173
      %s175 = ssub.s32 %s15, %s22
      %p176 = scmp.eq.s32.totalorder %s175, 0
      %s178 = sadd.s32 %s177, 1
      %s179 = scalar_select %p176, %s177, %s178
      %p182 = pneg %p176
      %p183 = scmp.eq.s32.totalorder %s15, 1
      %p184 = por %p182, %p183
      %p185 = scmp.ne.s32.totalorder %s177, %s180
      %p186 = scmp.eq.s32.totalorder %s15, 0
      %p187 = por %p185, %p186
      %p188 = scmp.ne.s32.totalorder %s177, %s180
      %p189 = scmp.eq.s32.totalorder %s20, 1
      %p190 = por %p188, %p189
      %p191 = scmp.ne.s32.totalorder %s180, %s181
      %p192 = scmp.eq.s32.totalorder %s20, 0
      %p193 = por %p191, %p192
      %p194 = scmp.ne.s32.totalorder %s180, %s181
      %p195 = scmp.eq.s32.totalorder %s21, 1
      %p196 = por %p194, %p195
      %p198 = scmp.ne.s32.totalorder %s181, %s197
      %p199 = scmp.eq.s32.totalorder %s21, 0
      %p200 = por %p198, %p199
      %p201 = scmp.le.s32.totalorder 1, %s15
      %p202 = scmp.lt.s32.totalorder %s15, 3
      %p203 = pnand %p201, %p202
      %p204 = pneg %p203
      // Predicated region
      $region9: #{energy_model_forward.1} parent=5 // pred_check
        _
      $region10: #{energy_model_forward.1} parent=5 // pred_check_branch
        %206 = sbr.rel (%p203) target = $region12
      $region11: #{energy_model_forward.1} parent=5 // pred_region
        %s207 = ssub.s32 %s15, 1
        // Predicated region
        $region13: #{energy_model_forward.1} parent=11 // pred_check
          %p208 = pneg %p62
        $region14: #{energy_model_forward.1} parent=11 // pred_check_branch
          %210 = sbr.rel (%p208) target = $region16
        $region15: #{energy_model_forward.1} parent=11 // pred_region
          _
        $region16: #{energy_model_forward.1} parent=11 // pred_fallthru
          _
        // Predicated region
        $region17: #{energy_model_forward.1} parent=11 // pred_check
          %p211 = pneg %p83
        $region18: #{energy_model_forward.1} parent=11 // pred_check_branch
          %213 = sbr.rel (%p211) target = $region20
        $region19: #{energy_model_forward.1} parent=11 // pred_region
          _
        $region20: #{energy_model_forward.1} parent=11 // pred_fallthru
          _
        // Predicated region
        $region21: #{energy_model_forward.1} parent=11 // pred_check
          %p214 = pneg %p104
        $region22: #{energy_model_forward.1} parent=11 // pred_check_branch
          %216 = sbr.rel (%p214) target = $region24
        $region23: #{energy_model_forward.1} parent=11 // pred_region
          _
        $region24: #{energy_model_forward.1} parent=11 // pred_fallthru
          _
        // Predicated region
        $region25: #{energy_model_forward.1} parent=11 // pred_check
          %p217 = pneg %p125
        $region26: #{energy_model_forward.1} parent=11 // pred_check_branch
          %219 = sbr.rel (%p217) target = $region28
        $region27: #{energy_model_forward.1} parent=11 // pred_region
          _
        $region28: #{energy_model_forward.1} parent=11 // pred_fallthru
          _
        // Predicated region
        $region29: #{energy_model_forward.1} parent=11 // pred_check
          %p220 = pneg %p146
        $region30: #{energy_model_forward.1} parent=11 // pred_check_branch
          %222 = sbr.rel (%p220) target = $region32
        $region31: #{energy_model_forward.1} parent=11 // pred_region
          _
        $region32: #{energy_model_forward.1} parent=11 // pred_fallthru
          _
        // Predicated region
        $region33: #{energy_model_forward.1} parent=11 // pred_check
          %p223 = pneg %p167
        $region34: #{energy_model_forward.1} parent=11 // pred_check_branch
          %225 = sbr.rel (%p223) target = $region36
        $region35: #{energy_model_forward.1} parent=11 // pred_region
          _
        $region36: #{energy_model_forward.1} parent=11 // pred_fallthru
          _
      $region12: #{energy_model_forward.1} parent=5 // pred_fallthru
        _
      %p226 = scmp.lt.s32.totalorder %s15, 2
      // Predicated region
      $region37: #{energy_model_forward.1} parent=5 // pred_check
        %p227 = pneg %p226
      $region38: #{energy_model_forward.1} parent=5 // pred_check_branch
        %229 = sbr.rel (%p227) target = $region40
      $region39: #{energy_model_forward.1} parent=5 // pred_region
        // Predicated region
        $region41: #{energy_model_forward.1} parent=39 // pred_check
          %p230 = pneg %p35
        $region42: #{energy_model_forward.1} parent=39 // pred_check_branch
          %232 = sbr.rel (%p230) target = $region44
        $region43: #{energy_model_forward.1} parent=39 // pred_region
          %s233 = sand.u32 %s25, 1
          %s234 = sand.u32 %s25, 1
          %s235 = smul.addr %s234, 12
          %s236 = scalar_lea.vmem [#allocation3], %s235
          %s237 = smul.addr %s15, 4
          %s238 = scalar_lea.vmem %s0, %s237
          // Predicated region
          $region45: #{energy_model_forward.1} parent=43 // pred_check
            _
          $region46: #{energy_model_forward.1} parent=43 // pred_check_branch
            %240 = sbr.rel (0) target = $region48
          $region47: #{energy_model_forward.1} parent=43 // pred_region
            // Predicated region
            $region49: #{energy_model_forward.1} parent=47 // pred_check
              _
            $region50: #{energy_model_forward.1} parent=47 // pred_check_branch
              %242 = sbr.rel target = $region52
            $region51: #{energy_model_forward.1} parent=47 // pred_region
              // Predicated region
              $region64: #{energy_model_forward.1} parent=51 // pred_check
                _
              $region65: #{energy_model_forward.1} parent=51 // pred_check_branch
                %262 = sbr.rel (0) target = $region67
              $region66: #{energy_model_forward.1} parent=51 // pred_region
                loop: start=0, step=1, limit=1
                $region68: #{energy_model_forward.1} parent=66 // loop_pre_header
                  _
                $region69: #{energy_model_forward.1} parent=66 // loop_header
                  %s264 = sphi 0, %s268
                  %p265 = scmp.ge.s32.totalorder %s264, 1
                  %s269 = sphi %s238, %s238
                  %s270 = sphi %s236, %s236
                $region70: #{energy_model_forward.1} parent=66 // loop_header_branch
                  %267 = sbr.rel (%p265) target = $region74
                $region71: #{energy_model_forward.1} parent=66 // loop_body
                  _
                $region72: #{energy_model_forward.1} parent=66 // loop_footer
                  %s268 = sadd.s32 1, %s264
                $region73: #{energy_model_forward.1} parent=66 // loop_footer_branch
                  %263 = sbr.rel target = $region69
                $region74: #{energy_model_forward.1} parent=66 // loop_exit
                  _
                %s272 = ssub.s32 16, 1
                loop: start=0, step=1, limit=1
                $region75: #{energy_model_forward.1} parent=66 // loop_pre_header
                  _
                $region76: #{energy_model_forward.1} parent=66 // loop_header
                  %s274 = sphi 0, %s278
                  %p275 = scmp.ge.s32.totalorder %s274, 1
                  %s279 = sphi %s238, %s238
                  %s280 = sphi %s236, %s236
                $region77: #{energy_model_forward.1} parent=66 // loop_header_branch
                  %277 = sbr.rel (%p275) target = $region81
                $region78: #{energy_model_forward.1} parent=66 // loop_body
                  %v281 = vld [vmem:[%s279] sm:%s272]
                  %282 = vst [vmem:[%s280] sm:%s272] %v281
                  %v283 = vld [vmem:[%s279 + $0x8] sm:%s272]
                  %284 = vst [vmem:[%s280 + $0x4] sm:%s272] %v283
                  %v285 = vld [vmem:[%s279 + $0x10] sm:%s272]
                  %286 = vst [vmem:[%s280 + $0x8] sm:%s272] %v285
                $region79: #{energy_model_forward.1} parent=66 // loop_footer
                  %s278 = sadd.s32 1, %s274
                $region80: #{energy_model_forward.1} parent=66 // loop_footer_branch
                  %273 = sbr.rel target = $region76
                $region81: #{energy_model_forward.1} parent=66 // loop_exit
                  _
              $region67: #{energy_model_forward.1} parent=51 // pred_fallthru
                _
            $region52: #{energy_model_forward.1} parent=47 // pred_fallthru
              _
            // Predicated region
            $region53: #{energy_model_forward.1} parent=47 // pred_check
              _
            $region54: #{energy_model_forward.1} parent=47 // pred_check_branch
              %244 = sbr.rel (0) target = $region56
            $region55: #{energy_model_forward.1} parent=47 // pred_region
              %s246 = ssub.s32 16, 1
              loop: start=0, step=1, limit=1
              $region57: #{energy_model_forward.1} parent=55 // loop_pre_header
                _
              $region58: #{energy_model_forward.1} parent=55 // loop_header
                %s248 = sphi 0, %s252
                %p249 = scmp.ge.s32.totalorder %s248, 1
                %s253 = sphi %s238, %s238
                %s254 = sphi %s236, %s236
              $region59: #{energy_model_forward.1} parent=55 // loop_header_branch
                %251 = sbr.rel (%p249) target = $region63
              $region60: #{energy_model_forward.1} parent=55 // loop_body
                %v255 = vld [vmem:[%s253] sm:%s246]
                %256 = vst [vmem:[%s254] sm:%s246] %v255
                %v257 = vld [vmem:[%s253 + $0x8] sm:%s246]
                %258 = vst [vmem:[%s254 + $0x4] sm:%s246] %v257
                %v259 = vld [vmem:[%s253 + $0x10] sm:%s246]
                %260 = vst [vmem:[%s254 + $0x8] sm:%s246] %v259
              $region61: #{energy_model_forward.1} parent=55 // loop_footer
                %s252 = sadd.s32 1, %s248
              $region62: #{energy_model_forward.1} parent=55 // loop_footer_branch
                %247 = sbr.rel target = $region58
              $region63: #{energy_model_forward.1} parent=55 // loop_exit
                _
            $region56: #{energy_model_forward.1} parent=47 // pred_fallthru
              _
          $region48: #{energy_model_forward.1} parent=43 // pred_fallthru
            _
          %287 = vnop
        $region44: #{energy_model_forward.1} parent=39 // pred_fallthru
          _
      $region40: #{energy_model_forward.1} parent=5 // pred_fallthru
        _
      %p288 = scmp.le.s32.totalorder 1, %s15
      %p289 = scmp.lt.s32.totalorder %s15, 3
      %p290 = pnand %p288, %p289
      %p291 = pneg %p290
      // Predicated region
      $region82: #{energy_model_forward.1} parent=5 // pred_check
        _
      $region83: #{energy_model_forward.1} parent=5 // pred_check_branch
        %293 = sbr.rel (%p290) target = $region85
      $region84: #{energy_model_forward.1} parent=5 // pred_region
        %s294 = ssub.s32 %s15, 1
        %s295 = sand.u32 %s28, 1
        %s296 = sand.u32 %s28, 1
        %s297 = smul.addr %s296, 12
        %s298 = scalar_lea.vmem [#allocation3], %s297
        // Predicated region
        $region86: #{energy_model_forward.1} parent=84 // pred_check
          %p299 = pneg %p41
        $region87: #{energy_model_forward.1} parent=84 // pred_check_branch
          %301 = sbr.rel (%p299) target = $region89
        $region88: #{energy_model_forward.1} parent=84 // pred_region
          _
        $region89: #{energy_model_forward.1} parent=84 // pred_fallthru
          _
        %s302 = sand.u32 %s28, 1
        %s303 = sand.u32 %s28, 1
        %s304 = smul.addr %s303, 12
        %s305 = scalar_lea.vmem [#allocation3], %s304
        %p306 = pneg %p41
        %p307 = pneg %p38
        %p308 = pneg %p62
        %p309 = pneg %p59
        %p310 = pneg %p83
        %p311 = pneg %p80
        %p312 = pneg %p104
        %p313 = pneg %p101
        %p314 = pneg %p125
        %p315 = pneg %p122
        %p316 = pneg %p146
        %p317 = pneg %p143
        %p318 = pneg %p167
        %p319 = pneg %p164
        %p320 = pneg %p193
        %p321 = pneg %p190
        %p322 = scmp.lt.s32.totalorder %s20, 1
        %s323 = scalar_select %p322, %s20, 1
        %s324 = scalar_lea.vmem %s7, %s323
        %p325 = scmp.lt.s32.totalorder %s20, 1
        %s326 = scalar_select %p325, %s20, 1
        %s327 = scalar_lea.vmem %s7, %s326
        %v329 = vld [vmem:[%s1] sm:$0xf]
        %v330 = vld [vmem:[%s1 + $0x4] sm:$0xf]
        %v331 = vld [vmem:[%s1 + $0x8] sm:$0xf]
        %v332 = vld [vmem:[%s1 + $0xc] sm:$0xf]
        %v333 = vld [vmem:[%s298] sm:$0xf]
        %v334 = vld [vmem:[%s298 + $0x4] sm:$0xf]
        %v335 = vld [vmem:[%s298 + $0x8] sm:$0xf]
        %v336 = vld [vmem:[%s2] sm:$0xff]
        %v337 = vld [vmem:[%s2 + $0x8] sm:$0xff]
        %v338 = vld [vmem:[%s2 + $0x10] sm:$0xff]
        %v339 = vld [vmem:[%s2 + $0x18] sm:$0xff]
        %341 = vset.pattern.permute.xlu0 0
        %342 = vperm.xlu0 %341, %v336
        %v343 = vpop.permute.xlu0 %342
        %346 = vset.pattern.permute.xlu0 0
        %347 = vperm.xlu0 %346, %v337
        %v348 = vpop.permute.xlu0 %347
        %351 = vset.pattern.permute.xlu0 0
        %352 = vperm.xlu0 %351, %v338
        %v353 = vpop.permute.xlu0 %352
        %356 = vset.pattern.permute.xlu0 0
        %357 = vperm.xlu0 %356, %v339
        %v358 = vpop.permute.xlu0 %357
        %v364 = vunpack.c.l.b16 %v329
        %v365 = vunpack.c.l.b16 %v330
        %v366 = vunpack.c.l.b16 %v331
        %v367 = vunpack.c.l.b16 %v332
        %v368 = vpack.c.b16 %v365, %v364
        %v369 = vpack.c.b16 %v367, %v366
        %v373 = vunpack.c.l.b16 %v333
        %v374 = vunpack.c.l.b16 %v334
        %v375 = vunpack.c.l.b16 %v335
        %v376 = vpack.c.b16 %v374, %v373
        %v377 = vpack.c.b16 %v375, %v375
        %vm379 = vcmask 195584
        %v381 = vsel %vm379, %v368, 0
        %v384 = vsel %vm379, %v369, 0
        %vm386 = vcmask 1043456
        %v388 = vsel %vm386, %v377, 0
        %390 = vmatprep.subr.bf16.mxu0 0
        %391 = vmatpush1.bf16.msra.mxu0 0
        %392 = vmatprep.subr.bf16.mxu0 0
        %393 = vmatpush1.bf16.msra.mxu0 0
        %394 = vmatprep.subr.bf16.mxu0 0
        %395 = vmatpush1.bf16.msra.mxu0 0
        %396 = vmatprep.subr.bf16.mxu0 0
        %397 = vmatpush1.bf16.msra.mxu0 0
        %398 = vmatprep.subr.bf16.mxu0 0
        %399 = vmatpush1.bf16.msra.mxu0 0
        %400 = vmatprep.subr.bf16.mxu0 0
        %401 = vmatpush1.bf16.msra.mxu0 0
        %402 = vmatprep.subr.bf16.mxu0 0
        %403 = vmatpush1.bf16.msra.mxu0 %v388
        %404 = vmatprep.subr.bf16.mxu0 0
        %405 = vmatpush1.bf16.msra.mxu0 %v376
        %406 = vmatprep.subr.bf16.mxu0 0
        %407 = vmatpush2.bf16.msra.mxu0 0
        %408 = vmatprep.subr.bf16.mxu0 0
        %409 = vmatpush2.bf16.msra.mxu0 0
        %410 = vmatprep.subr.bf16.mxu0 0
        %411 = vmatpush2.bf16.msra.mxu0 0
        %412 = vmatprep.subr.bf16.mxu0 0
        %413 = vmatpush2.bf16.msra.mxu0 0
        %414 = vmatprep.subr.bf16.mxu0 0
        %415 = vmatpush2.bf16.msra.mxu0 0
        %416 = vmatprep.subr.bf16.mxu0 0
        %417 = vmatpush2.bf16.msra.mxu0 0
        %418 = vmatprep.subr.bf16.mxu0 0
        %419 = vmatpush2.bf16.msra.mxu0 0
        %420 = vmatprep.subr.bf16.mxu0 0
        %421 = vmatpush2.bf16.msra.mxu0 0
        %422 = vmatprep.mubr.bf16.mxu0 0
        %423 = vmatmul.mubr.bf16.gmra.mxu0 %v381
        %v424 = vpop.f32.mrf.mxu0
        %v425 = vadd.f32 %v343, %v424
        %v426 = vpop.f32.mrf.mxu0
        %v427 = vpop.f32.mrf.mxu0
        %v428 = vadd.f32 %v348, %v427
        %v429 = vpop.f32.mrf.mxu0
        %430 = vmatprep.mubr.bf16.mxu0 0
        %431 = vmatmul.mubr.bf16.gmra.mxu0 %v384
        %v432 = vpop.f32.mrf.mxu0
        %v433 = vadd.f32 %v353, %v432
        %v434 = vpop.f32.mrf.mxu0
        %v435 = vpop.f32.mrf.mxu0
        %v436 = vadd.f32 %v358, %v435
        %v437 = vpop.f32.mrf.mxu0
        %438 = vdwg.mxu0
        %v439 = vmax.f32 %v425, 0.0
        %v440 = vmax.f32 %v428, 0.0
        %v441 = vmax.f32 %v433, 0.0
        %v442 = vmax.f32 %v436, 0.0
        %v443 = vld [vmem:[%s3] sm:$0xf]
        %v444 = vld [vmem:[%s3 + $0x4] sm:$0xf]
        %v445 = vld [vmem:[%s3 + $0x8] sm:$0xf]
        %v446 = vld [vmem:[%s3 + $0xc] sm:$0xf]
        %v447 = vpack.c.bf16 %v440, %v439
        %v448 = vpack.c.bf16 %v442, %v441
        %v449 = vld [vmem:[%s4] sm:$0xff]
        %v450 = vld [vmem:[%s4 + $0x8] sm:$0xff]
        %v451 = vld [vmem:[%s4 + $0x10] sm:$0xff]
        %v452 = vld [vmem:[%s4 + $0x18] sm:$0xff]
        %454 = vset.pattern.permute.xlu0 0
        %455 = vperm.xlu0 %454, %v449
        %v456 = vpop.permute.xlu0 %455
        %459 = vset.pattern.permute.xlu0 0
        %460 = vperm.xlu0 %459, %v450
        %v461 = vpop.permute.xlu0 %460
        %464 = vset.pattern.permute.xlu0 0
        %465 = vperm.xlu0 %464, %v451
        %v466 = vpop.permute.xlu0 %465
        %469 = vset.pattern.permute.xlu0 0
        %470 = vperm.xlu0 %469, %v452
        %v471 = vpop.permute.xlu0 %470
        %v477 = vunpack.c.l.b16 %v443
        %v478 = vunpack.c.l.b16 %v444
        %v479 = vunpack.c.l.b16 %v445
        %v480 = vunpack.c.l.b16 %v446
        %v481 = vpack.c.b16 %v478, %v477
        %v482 = vpack.c.b16 %v480, %v479
        %vm483 = vcmask 261120
        %v485 = vsel %vm483, %v481, 0
        %v488 = vsel %vm483, %v482, 0
        %490 = vmatprep.subr.bf16.mxu0 0
        %491 = vmatpush1.bf16.msra.mxu0 0
        %492 = vmatprep.subr.bf16.mxu0 0
        %493 = vmatpush1.bf16.msra.mxu0 0
        %494 = vmatprep.subr.bf16.mxu0 0
        %495 = vmatpush1.bf16.msra.mxu0 0
        %496 = vmatprep.subr.bf16.mxu0 0
        %497 = vmatpush1.bf16.msra.mxu0 0
        %498 = vmatprep.subr.bf16.mxu0 0
        %499 = vmatpush1.bf16.msra.mxu0 0
        %500 = vmatprep.subr.bf16.mxu0 0
        %501 = vmatpush1.bf16.msra.mxu0 0
        %502 = vmatprep.subr.bf16.mxu0 0
        %503 = vmatpush1.bf16.msra.mxu0 %v448
        %504 = vmatprep.subr.bf16.mxu0 0
        %505 = vmatpush1.bf16.msra.mxu0 %v447
        %506 = vmatprep.subr.bf16.mxu0 0
        %507 = vmatpush2.bf16.msra.mxu0 0
        %508 = vmatprep.subr.bf16.mxu0 0
        %509 = vmatpush2.bf16.msra.mxu0 0
        %510 = vmatprep.subr.bf16.mxu0 0
        %511 = vmatpush2.bf16.msra.mxu0 0
        %512 = vmatprep.subr.bf16.mxu0 0
        %513 = vmatpush2.bf16.msra.mxu0 0
        %514 = vmatprep.subr.bf16.mxu0 0
        %515 = vmatpush2.bf16.msra.mxu0 0
        %516 = vmatprep.subr.bf16.mxu0 0
        %517 = vmatpush2.bf16.msra.mxu0 0
        %518 = vmatprep.subr.bf16.mxu0 0
        %519 = vmatpush2.bf16.msra.mxu0 0
        %520 = vmatprep.subr.bf16.mxu0 0
        %521 = vmatpush2.bf16.msra.mxu0 0
        %522 = vmatprep.mubr.bf16.mxu0 0
        %523 = vmatmul.mubr.bf16.gmra.mxu0 %v485
        %v524 = vpop.f32.mrf.mxu0
        %v525 = vadd.f32 %v456, %v524
        %v526 = vpop.f32.mrf.mxu0
        %v527 = vpop.f32.mrf.mxu0
        %v528 = vadd.f32 %v461, %v527
        %v529 = vpop.f32.mrf.mxu0
        %530 = vmatprep.mubr.bf16.mxu0 0
        %531 = vmatmul.mubr.bf16.gmra.mxu0 %v488
        %v532 = vpop.f32.mrf.mxu0
        %v533 = vadd.f32 %v466, %v532
        %v534 = vpop.f32.mrf.mxu0
        %v535 = vpop.f32.mrf.mxu0
        %v536 = vadd.f32 %v471, %v535
        %v537 = vpop.f32.mrf.mxu0
        %538 = vdwg.mxu0
        %v539 = vmax.f32 %v525, 0.0
        %v540 = vmax.f32 %v528, 0.0
        %v541 = vmax.f32 %v533, 0.0
        %v542 = vmax.f32 %v536, 0.0
        %v543 = vld [vmem:[%s5] sm:$0x1]
        %v544 = vpack.c.bf16 %v540, %v539
        %v545 = vpack.c.bf16 %v542, %v541
        %v546 = vld [vmem:[#allocation2] sm:$0x1]
        %548 = vset.pattern.permute.xlu0 0
        %549 = vperm.xlu0 %548, %v546
        %v550 = vpop.permute.xlu0 %549
        %v552 = vlaneseq
        %v553 = vshrl.u32 %v552, 7
        %v554 = vsub.s32 0, %v553
        %v555 = vrot.slane %v550, %v554
        %v557 = vsel %vm483, %v543, 0
        %559 = vmatprep.subr.bf16.mxu0 0
        %560 = vmatpush1.bf16.msra.mxu0 0
        %561 = vmatprep.subr.bf16.mxu0 0
        %562 = vmatpush1.bf16.msra.mxu0 0
        %563 = vmatprep.subr.bf16.mxu0 0
        %564 = vmatpush1.bf16.msra.mxu0 0
        %565 = vmatprep.subr.bf16.mxu0 0
        %566 = vmatpush1.bf16.msra.mxu0 0
        %567 = vmatprep.subr.bf16.mxu0 0
        %568 = vmatpush1.bf16.msra.mxu0 0
        %569 = vmatprep.subr.bf16.mxu0 0
        %570 = vmatpush1.bf16.msra.mxu0 0
        %571 = vmatprep.subr.bf16.mxu0 0
        %572 = vmatpush1.bf16.msra.mxu0 %v545
        %573 = vmatprep.subr.bf16.mxu0 0
        %574 = vmatpush1.bf16.msra.mxu0 %v544
        %575 = vmatprep.subr.bf16.mxu0 0
        %576 = vmatpush2.bf16.msra.mxu0 0
        %577 = vmatprep.subr.bf16.mxu0 0
        %578 = vmatpush2.bf16.msra.mxu0 0
        %579 = vmatprep.subr.bf16.mxu0 0
        %580 = vmatpush2.bf16.msra.mxu0 0
        %581 = vmatprep.subr.bf16.mxu0 0
        %582 = vmatpush2.bf16.msra.mxu0 0
        %583 = vmatprep.subr.bf16.mxu0 0
        %584 = vmatpush2.bf16.msra.mxu0 0
        %585 = vmatprep.subr.bf16.mxu0 0
        %586 = vmatpush2.bf16.msra.mxu0 0
        %587 = vmatprep.subr.bf16.mxu0 0
        %588 = vmatpush2.bf16.msra.mxu0 0
        %589 = vmatprep.subr.bf16.mxu0 0
        %590 = vmatpush2.bf16.msra.mxu0 0
        %591 = vmatprep.mubr.bf16.mxu0 0
        %592 = vmatmul.mubr.bf16.gmra.mxu0 %v557
        %v593 = vpop.f32.mrf.mxu0
        %v594 = vadd.f32 %v555, %v593
        %v595 = vpop.f32.mrf.mxu0
        %v596 = vpop.f32.mrf.mxu0
        %v597 = vpop.f32.mrf.mxu0
        %598 = vdwg.mxu0
        %599 = vst [vmem:[%s327] sm:$0x1] %v594
        %p600 = scmp.lt.s32.totalorder %s20, 1
        %s601 = scalar_select %p600, %s20, 1
        %s602 = scalar_lea.vmem %s7, %s601
        // Predicated region
        $region90: #{energy_model_forward.1} parent=84 // pred_check
          %p603 = pneg %p190
        $region91: #{energy_model_forward.1} parent=84 // pred_check_branch
          %605 = sbr.rel (%p603) target = $region93
        $region92: #{energy_model_forward.1} parent=84 // pred_region
          _
        $region93: #{energy_model_forward.1} parent=84 // pred_fallthru
          _
      $region85: #{energy_model_forward.1} parent=5 // pred_fallthru
        _
      %p606 = scmp.le.s32.totalorder 2, %s15
      // Predicated region
      $region94: #{energy_model_forward.1} parent=5 // pred_check
        %p607 = pneg %p606
      $region95: #{energy_model_forward.1} parent=5 // pred_check_branch
        %609 = sbr.rel (%p607) target = $region97
      $region96: #{energy_model_forward.1} parent=5 // pred_region
        %s610 = ssub.s32 %s15, 2
        // Predicated region
        $region98: #{energy_model_forward.1} parent=96 // pred_check
          %p611 = pneg %p196
        $region99: #{energy_model_forward.1} parent=96 // pred_check_branch
          %613 = sbr.rel (%p611) target = $region101
        $region100: #{energy_model_forward.1} parent=96 // pred_region
          %p614 = scmp.lt.s32.totalorder %s21, 1
          %s615 = scalar_select %p614, %s21, 1
          %s616 = scalar_lea.vmem %s7, %s615
        $region101: #{energy_model_forward.1} parent=96 // pred_fallthru
          _
      $region97: #{energy_model_forward.1} parent=5 // pred_fallthru
        _
    $region6: #{energy_model_forward.1} parent=1 // loop_footer
      %s19 = sadd.s32 1, %s15
    $region7: #{energy_model_forward.1} parent=1 // loop_footer_branch
      %14 = sbr.rel target = $region3
    $region8: #{energy_model_forward.1} parent=1 // loop_exit
      _

</llo_original>
